<compile_context>
chip_gen: v5e
topology: v5e:2x2
jax: 0.10.0
libtpu: 0.0.40
codegen_flags: <defaults>
</compile_context>

<pallas_src>
import jax
import jax.numpy as jnp
from jax.experimental import pallas as pl
from jax.experimental.pallas import tpu as pltpu


def _round_up(x, m):
    return (x + m - 1) // m * m


# Defaults are clipped to the (padded) problem size below.
DEFAULT_TM, DEFAULT_TN, DEFAULT_TK = 512, 1024, 1024


def _linear_kernel(x_ref, w_ref, b_ref, o_ref):
    # x_ref: (tm, tk) f32, w_ref: (tk, tn) bf16 (pre-transposed weight),
    # b_ref: (1, tn) f32, o_ref: (tm, tn) f32 (doubles as the accumulator).
    k = pl.program_id(2)

    @pl.when(k == 0)
    def _():
        # Initialize the resident output block with the bias (broadcast over
        # sublanes) instead of zeros -> bias add is free.
        o_ref[...] = jnp.broadcast_to(b_ref[...], o_ref.shape)

    # Per-tile bf16 cast of the activations (avoids a separate HBM cast pass),
    # standard MXU contraction with f32 accumulation straight into o_ref.
    x_bf = x_ref[...].astype(jnp.bfloat16)
    o_ref[...] += jnp.dot(x_bf, w_ref[...], preferred_element_type=jnp.float32)


def prepare_linear_params(weight, bias, *, tn=DEFAULT_TN, tk=DEFAULT_TK):
    """One-time (cacheable) parameter prep: transpose, bf16-cast, zero-pad.

    weight: (num_classes, input_dim) f32  (PyTorch layout)
    bias:   (num_classes,) f32
    """
    C, D = weight.shape
    tn = min(tn, _round_up(C, 128))
    tk = min(tk, _round_up(D, 128))
    C_pad = _round_up(C, tn)
    D_pad = _round_up(D, tk)

    # (D, C) layout so the kernel contracts A(tm,tk) . B(tk,tn) with no
    # per-tile XLU transpose; bf16 halves the dominant weight HBM stream.
    w_t = weight.T.astype(jnp.bfloat16)
    if (D_pad, C_pad) != (D, C):
        w_t = jnp.pad(w_t, ((0, D_pad - D), (0, C_pad - C)))
    b2 = bias.astype(jnp.float32).reshape(1, C)
    if C_pad != C:
        b2 = jnp.pad(b2, ((0, 0), (0, C_pad - C)))

    return {"w_t": w_t, "b2": b2, "C": C, "D": D, "tn": tn, "tk": tk}


def classifier_forward(x, params, *, tm=DEFAULT_TM):
    """Equivalent of nn.Linear(input_dim, num_classes)(x) -> (B, num_classes) f32."""
    B, D = x.shape
    assert D == params["D"], "feature dim mismatch"
    w_t, b2 = params["w_t"], params["b2"]
    tn, tk = params["tn"], params["tk"]
    D_pad, C_pad = w_t.shape
    C = params["C"]

    # tm rounded to a multiple of 16 (bf16 sublane packing of the lhs tile).
    tm = min(tm, _round_up(B, 16))

    # v7x has 2 TensorCores: try to expose >= 2 parallel grid blocks by
    # halving tiles while they stay hardware-aligned (tn mult of 128, tm of 16).
    def _n_parallel(tm_, tn_):
        return (_round_up(B, tm_) // tm_) * (C_pad // tn_)

    while _n_parallel(tm, tn) < 2:
        if tn % 256 == 0:
            tn //= 2
        elif tm % 32 == 0:
            tm //= 2
        else:
            break

    B_pad = _round_up(B, tm)

    # Activations stay f32 (cast happens per-tile in the kernel); zero-pad so
    # padded K columns contribute nothing and padded rows are sliced off.
    if (B_pad, D_pad) != (B, D):
        x = jnp.pad(x, ((0, B_pad - B), (0, D_pad - D)))

    grid = (B_pad // tm, C_pad // tn, D_pad // tk)

    cost = pl.CostEstimate(
        flops=2 * B_pad * D_pad * C_pad,
        transcendentals=0,
        bytes_accessed=(B_pad * D_pad * 4          # x (f32)
                        + C_pad * D_pad * 2        # weight (bf16, pre-cast)
                        + C_pad * 4                # bias (f32)
                        + B_pad * C_pad * 4),      # out (f32)
    )

    out_pad = pl.pallas_call(
        _linear_kernel,
        out_shape=jax.ShapeDtypeStruct((B_pad, C_pad), jnp.float32),
        grid_spec=pltpu.PrefetchScalarGridSpec(
            num_scalar_prefetch=0,
            grid=grid,
            in_specs=[
                pl.BlockSpec((tm, tk), lambda i, j, k: (i, k)),   # x tile
                pl.BlockSpec((tk, tn), lambda i, j, k: (k, j)),   # weight tile (D,C)
                pl.BlockSpec((1, tn), lambda i, j, k: (0, j)),    # bias tile
            ],
            out_specs=pl.BlockSpec((tm, tn), lambda i, j, k: (i, j)),
        ),
        compiler_params=pltpu.CompilerParams(
            dimension_semantics=("parallel", "parallel", "arbitrary"),
            vmem_limit_bytes=48 * 1024 * 1024,
        ),
        cost_estimate=cost,
    )(x, w_t, b2)

    # Slice the zero-padded rows/columns back off.
    return out_pad[:B, :C]


if __name__ == "__main__":
    # Small shapes consistent with the module: input_dim=32, num_classes=10.
    B, INPUT_DIM, NUM_CLASSES = 2, 32, 10

    key = jax.random.PRNGKey(0)
    kx, kw, kb = jax.random.split(key, 3)

    x = jax.random.normal(kx, (B, INPUT_DIM), dtype=jnp.float32)
    # Deterministic parameter init (mimics nn.Linear's uniform(-1/sqrt(D), 1/sqrt(D))).
    bound = 1.0 / (INPUT_DIM ** 0.5)
    weight = jax.random.uniform(kw, (NUM_CLASSES, INPUT_DIM),
                                minval=-bound, maxval=bound, dtype=jnp.float32)
    bias = jax.random.uniform(kb, (NUM_CLASSES,),
                              minval=-bound, maxval=bound, dtype=jnp.float32)

    # One-time parameter prep (would be cached across calls in a serving path).
    params = prepare_linear_params(weight, bias)

    out = classifier_forward(x, params)
    out = jax.block_until_ready(out)

    assert out.shape == (B, NUM_CLASSES)

    # Reference with matching numerics (bf16 rounding of x and w, f32 accumulate).
    x_bf = x.astype(jnp.bfloat16).astype(jnp.float32)
    w_bf = weight.astype(jnp.bfloat16).astype(jnp.float32)
    ref = x_bf @ w_bf.T + bias
    assert jnp.allclose(out, ref, atol=1e-3, rtol=1e-3)

    # Loose check against the pure-f32 reference (bf16 rounding only).
    ref_f32 = x @ weight.T + bias
    assert jnp.allclose(out, ref_f32, atol=3e-2, rtol=3e-2)

    print("KERNEL_OK")
</pallas_src>

<mosaic_0001>
module attributes {stable_mosaic.version = 11 : i64} {
  func.func @_linear_kernel(%arg0: i32, %arg1: i32, %arg2: i32, %arg3: memref<16x128xf32, #tpu.memory_space<vmem>>, %arg4: memref<128x128xbf16, #tpu.memory_space<vmem>>, %arg5: memref<1x128xf32, #tpu.memory_space<vmem>>, %arg6: memref<16x128xf32, #tpu.memory_space<vmem>>) attributes {dimension_semantics = [#tpu.dimension_semantics<parallel>, #tpu.dimension_semantics<parallel>, #tpu.dimension_semantics<arbitrary>], iteration_bounds = array<i64: 1, 1, 1>, scalar_prefetch = 0 : i64, scratch_operands = 0 : i64, tpu.core_type = #tpu.core_type<tc>, window_params = [{transform_indices = @transform_0, window_bounds = array<i64: 16, 128>}, {transform_indices = @transform_1, window_bounds = array<i64: 128, 128>}, {transform_indices = @transform_2, window_bounds = array<i64: 1, 128>}, {transform_indices = @transform_3, window_bounds = array<i64: 16, 128>}]} {
    %c0_i32 = arith.constant 0 : i32
    %0 = arith.cmpi eq, %arg2, %c0_i32 : i32
    %1 = arith.extui %0 : i1 to i32
    %c0_i32_0 = arith.constant 0 : i32
    %2 = arith.cmpi ne, %1, %c0_i32_0 : i32
    scf.if %2 {
      %c0_8 = arith.constant 0 : index
      %c0_9 = arith.constant 0 : index
      %10 = vector.load %arg5[%c0_8, %c0_9] : memref<1x128xf32, #tpu.memory_space<vmem>>, vector<1x128xf32>
      %11 = vector.shape_cast %10 : vector<1x128xf32> to vector<1x128xf32>
      %12 = vector.broadcast %11 : vector<1x128xf32> to vector<16x128xf32>
      %c0_10 = arith.constant 0 : index
      %c0_11 = arith.constant 0 : index
      %13 = vector.load %arg6[%c0_10, %c0_11] : memref<16x128xf32, #tpu.memory_space<vmem>>, vector<16x128xf32>
      tpu.vector_store %arg6[%c0_10, %c0_11], %12 {strides = array<i32>} : memref<16x128xf32, #tpu.memory_space<vmem>>, vector<16x128xf32>,
    } else {
    }
    %c0 = arith.constant 0 : index
    %c0_1 = arith.constant 0 : index
    %3 = vector.load %arg3[%c0, %c0_1] : memref<16x128xf32, #tpu.memory_space<vmem>>, vector<16x128xf32>
    %4 = arith.truncf %3 : vector<16x128xf32> to vector<16x128xbf16>
    %c0_2 = arith.constant 0 : index
    %c0_3 = arith.constant 0 : index
    %5 = vector.load %arg6[%c0_2, %c0_3] : memref<16x128xf32, #tpu.memory_space<vmem>>, vector<16x128xf32>
    %c0_4 = arith.constant 0 : index
    %c0_5 = arith.constant 0 : index
    %6 = vector.load %arg4[%c0_4, %c0_5] : memref<128x128xbf16, #tpu.memory_space<vmem>>, vector<128x128xbf16>
    %cst = arith.constant dense<0.000000e+00> : vector<16x128xf32>
    %7 = tpu.matmul %4, %6, %cst {dimension_numbers = #tpu.dot_dimension_numbers<[1], [0], [0], [1], [0, 0, 1, 1], [], []>} : vector<16x128xbf16>, vector<128x128xbf16>, vector<16x128xf32> -> vector<16x128xf32>
    %8 = arith.addf %5, %7 : vector<16x128xf32>
    %c0_6 = arith.constant 0 : index
    %c0_7 = arith.constant 0 : index
    %9 = vector.load %arg6[%c0_6, %c0_7] : memref<16x128xf32, #tpu.memory_space<vmem>>, vector<16x128xf32>
    tpu.vector_store %arg6[%c0_6, %c0_7], %8 {strides = array<i32>} : memref<16x128xf32, #tpu.memory_space<vmem>>, vector<16x128xf32>,
    return
  }
  func.func @transform_0(%arg0: i32, %arg1: i32, %arg2: i32) -> (i32, i32) {
    %c0_i32 = arith.constant 0 : i32
    return %arg0, %arg2 : i32, i32
  }
  func.func @transform_1(%arg0: i32, %arg1: i32, %arg2: i32) -> (i32, i32) {
    %c0_i32 = arith.constant 0 : i32
    return %arg2, %arg1 : i32, i32
  }
  func.func @transform_2(%arg0: i32, %arg1: i32, %arg2: i32) -> (i32, i32) {
    %c0_i32 = arith.constant 0 : i32
    %c0_i32_0 = arith.constant 0 : i32
    return %c0_i32, %arg1 : i32, i32
  }
  func.func @transform_3(%arg0: i32, %arg1: i32, %arg2: i32) -> (i32, i32) {
    %c0_i32 = arith.constant 0 : i32
    return %arg0, %arg1 : i32, i32
  }
}

</mosaic_0001>

<llo_original>
// kernel: tpu_custom_call.1
$region0: #{tpu_custom_call.1}
  #allocation0 [shape = 'u32[]', space=smem, size = 0x4, offset = 0x4, fixed_abs, tag = 'smem constant byte address 0x4 - core index']
  #allocation1 [shape = 'u32[72,128]{1,0:T(1,128)}', space=vmem, size = 0x9000, scoped, tag = 'internal scratch']
  %s0 = inlined_call_operand.hbm [shape: f32[16,128], index: 0, kind: input, shape index: {}]
  %s1 = inlined_call_operand.hbm [shape: bf16[128,128], index: 1, kind: input, shape index: {}]
  %s2 = inlined_call_operand.vmem [shape: f32[1,128], index: 2, kind: input, shape index: {}]
  %s3 = inlined_call_operand.hbm [shape: f32[16,128], index: 3, kind: output, shape index: {}]
  %s4 = sld [smem:[#allocation0]]
  $region34: #{tpu_custom_call.1} parent=0
    _
  %s6 = ssub.s32 1, %s4
  %s7 = scalar_select 0, %s6, %s4
  $region1: #{tpu_custom_call.1} parent=0
    #allocation2 [shape = 'u8[8192]{0}', space=vmem, size = 0x2000, scoped, tag = 'input window, operand 0, single buffered']
    #allocation3 [shape = 's32[1]{0}', space=sflag, size = 0x4, scoped, tag = 'scoped memory for tpu_custom_call.1']
    #allocation4 [shape = 's32[1]{0}', space=sflag, size = 0x4, scoped, tag = 'scoped memory for tpu_custom_call.1']
    #allocation5 [shape = 'u8[32768]{0}', space=vmem, size = 0x8000, scoped, tag = 'input window, operand 1, single buffered']
    #allocation6 [shape = 's32[1]{0}', space=sflag, size = 0x4, scoped, tag = 'scoped memory for tpu_custom_call.1']
    #allocation7 [shape = 'u8[8192]{0}', space=vmem, size = 0x2000, scoped, tag = 'output window, operand 0, single buffered']
    %8 = vsyncpa [#allocation3], 0
    %9 = vsyncpa [#allocation6], 0
    %10 = vsyncpa [#allocation4], 0
    // Predicated region
    $region2: #{tpu_custom_call.1} parent=1 // pred_check
      _
    $region3: #{tpu_custom_call.1} parent=1 // pred_check_branch
      %12 = sbr.rel (0) target = $region5
    $region4: #{tpu_custom_call.1} parent=1 // pred_region
      %14 = vsyncadd [#allocation3], 0
      %s15 = sshll.u32 %s0, 4
      %s16 = int_to_ptr.hbm [resolvable:$true] %s15
      %s17 = sshll.u32 [#allocation2], 4
      %s18 = int_to_ptr.vmem [resolvable:$true] %s17
      %23 = dma.hbm_to_vmem [thread:$0]  %s16, 256, %s18, [#allocation3], 128, 128, 8
    $region5: #{tpu_custom_call.1} parent=1 // pred_fallthru
      _
    // Predicated region
    $region6: #{tpu_custom_call.1} parent=1 // pred_check
      _
    $region7: #{tpu_custom_call.1} parent=1 // pred_check_branch
      %25 = sbr.rel (0) target = $region9
    $region8: #{tpu_custom_call.1} parent=1 // pred_region
      %27 = vsyncadd [#allocation6], 0
      %s28 = sshll.u32 %s1, 4
      %s29 = int_to_ptr.hbm [resolvable:$true] %s28
      %s30 = sshll.u32 [#allocation5], 4
      %s31 = int_to_ptr.vmem [resolvable:$true] %s30
      %36 = dma.hbm_to_vmem [thread:$0]  %s29, 1024, %s31, [#allocation6], 64, 64, 4
    $region9: #{tpu_custom_call.1} parent=1 // pred_fallthru
      _
    // Predicated region
    $region10: #{tpu_custom_call.1} parent=1 // pred_check
      _
    $region11: #{tpu_custom_call.1} parent=1 // pred_check_branch
      %38 = sbr.rel (0) target = $region13
    $region12: #{tpu_custom_call.1} parent=1 // pred_region
      _
    $region13: #{tpu_custom_call.1} parent=1 // pred_fallthru
      _
    // Predicated region
    $region14: #{tpu_custom_call.1} parent=1 // pred_check
      _
    $region15: #{tpu_custom_call.1} parent=1 // pred_check_branch
      %40 = sbr.rel (0) target = $region17
    $region16: #{tpu_custom_call.1} parent=1 // pred_region
      %42 = dma.done [#allocation3], 256
    $region17: #{tpu_custom_call.1} parent=1 // pred_fallthru
      _
    // Predicated region
    $region18: #{tpu_custom_call.1} parent=1 // pred_check
      _
    $region19: #{tpu_custom_call.1} parent=1 // pred_check_branch
      %44 = sbr.rel (0) target = $region21
    $region20: #{tpu_custom_call.1} parent=1 // pred_region
      %46 = dma.done [#allocation6], 1024
    $region21: #{tpu_custom_call.1} parent=1 // pred_fallthru
      _
    %p47 = scmp.eq.s32.totalorder 0, 0
    // Predicated region
    $region22: #{tpu_custom_call.1} parent=1 // pred_check
      %p48 = pneg %p47
    $region23: #{tpu_custom_call.1} parent=1 // pred_check_branch
      %50 = sbr.rel (%p48) target = $region25
    $region24: #{tpu_custom_call.1} parent=1 // pred_region
      %v51 = vld [vmem:[%s2] sm:$0x1]
      %v53 = vperm.slane %v51, 0
      %55 = vst [vmem:[#allocation7] sm:$0xff] %v53
      %56 = vst [vmem:[#allocation7 + $0x8] sm:$0xff] %v53
    $region25: #{tpu_custom_call.1} parent=1 // pred_fallthru
      _
    %v57 = vld [vmem:[#allocation2] sm:$0xff]
    %v58 = vld [vmem:[#allocation2 + $0x8] sm:$0xff]
    %v59 = vpack.c.bf16 %v58, %v57
    %v60 = vld [vmem:[#allocation7] sm:$0xff]
    %v61 = vld [vmem:[#allocation7 + $0x8] sm:$0xff]
    %v62 = vld [vmem:[#allocation5] sm:$0xf]
    %v63 = vld [vmem:[#allocation5 + $0x4] sm:$0xf]
    %v64 = vld [vmem:[#allocation5 + $0x8] sm:$0xf]
    %v65 = vld [vmem:[#allocation5 + $0xc] sm:$0xf]
    %v66 = vld [vmem:[#allocation5 + $0x10] sm:$0xf]
    %v67 = vld [vmem:[#allocation5 + $0x14] sm:$0xf]
    %v68 = vld [vmem:[#allocation5 + $0x18] sm:$0xf]
    %v69 = vld [vmem:[#allocation5 + $0x1c] sm:$0xf]
    %v70 = vld [vmem:[#allocation5 + $0x20] sm:$0xf]
    %v71 = vld [vmem:[#allocation5 + $0x24] sm:$0xf]
    %v72 = vld [vmem:[#allocation5 + $0x28] sm:$0xf]
    %v73 = vld [vmem:[#allocation5 + $0x2c] sm:$0xf]
    %v74 = vld [vmem:[#allocation5 + $0x30] sm:$0xf]
    %v75 = vld [vmem:[#allocation5 + $0x34] sm:$0xf]
    %v76 = vld [vmem:[#allocation5 + $0x38] sm:$0xf]
    %v77 = vld [vmem:[#allocation5 + $0x3c] sm:$0xf]
    %v94 = vunpack.c.l.b16 %v62
    %v95 = vunpack.c.l.b16 %v63
    %v96 = vunpack.c.l.b16 %v64
    %v97 = vunpack.c.l.b16 %v65
    %v98 = vunpack.c.l.b16 %v66
    %v99 = vunpack.c.l.b16 %v67
    %v100 = vunpack.c.l.b16 %v68
    %v101 = vunpack.c.l.b16 %v69
    %v102 = vunpack.c.l.b16 %v70
    %v103 = vunpack.c.l.b16 %v71
    %v104 = vunpack.c.l.b16 %v72
    %v105 = vunpack.c.l.b16 %v73
    %v106 = vunpack.c.l.b16 %v74
    %v107 = vunpack.c.l.b16 %v75
    %v108 = vunpack.c.l.b16 %v76
    %v109 = vunpack.c.l.b16 %v77
    %v110 = vpack.c.b16 %v95, %v94
    %v111 = vpack.c.b16 %v97, %v96
    %v112 = vpack.c.b16 %v99, %v98
    %v113 = vpack.c.b16 %v101, %v100
    %v114 = vpack.c.b16 %v103, %v102
    %v115 = vpack.c.b16 %v105, %v104
    %v116 = vpack.c.b16 %v107, %v106
    %v117 = vpack.c.b16 %v109, %v108
    %126 = vmatpush.bf16.msra.mxu0 %v117
    %127 = vmatpush.bf16.msra.mxu0 %v116
    %128 = vmatpush.bf16.msra.mxu0 %v115
    %129 = vmatpush.bf16.msra.mxu0 %v114
    %130 = vmatpush.bf16.msra.mxu0 %v113
    %131 = vmatpush.bf16.msra.mxu0 %v112
    %132 = vmatpush.bf16.msra.mxu0 %v111
    %133 = vmatpush.bf16.msra.mxu0 %v110
    %134 = vmatmul.bf16.gmra.mxu0 %v59
    %v135 = vpop.f32.mrf.mxu0
    %v136 = vadd.f32 0.0, %v135
    %v137 = vpop.f32.mrf.mxu0
    %v138 = vadd.f32 0.0, %v137
    %139 = vdwg.mxu0
    %v140 = vadd.f32 %v60, %v136
    %v141 = vadd.f32 %v61, %v138
    %142 = vst [vmem:[#allocation7] sm:$0xff] %v140
    %143 = vst [vmem:[#allocation7 + $0x8] sm:$0xff] %v141
    // Predicated region
    $region26: #{tpu_custom_call.1} parent=1 // pred_check
      _
    $region27: #{tpu_custom_call.1} parent=1 // pred_check_branch
      %145 = sbr.rel (0) target = $region29
    $region28: #{tpu_custom_call.1} parent=1 // pred_region
      %147 = vsyncadd [#allocation4], 0
      %s148 = sshll.u32 [#allocation7], 4
      %s149 = int_to_ptr.vmem [resolvable:$true] %s148
      %s150 = sshll.u32 %s3, 4
      %s151 = int_to_ptr.hbm [resolvable:$true] %s150
      %156 = dma.vmem_to_hbm [thread:$0]  %s149, 256, %s151, [#allocation4], 128, 128, 8
    $region29: #{tpu_custom_call.1} parent=1 // pred_fallthru
      _
    // Predicated region
    $region30: #{tpu_custom_call.1} parent=1 // pred_check
      _
    $region31: #{tpu_custom_call.1} parent=1 // pred_check_branch
      %158 = sbr.rel (0) target = $region33
    $region32: #{tpu_custom_call.1} parent=1 // pred_region
      %160 = dma.done [#allocation4], 256
    $region33: #{tpu_custom_call.1} parent=1 // pred_fallthru
      _
    %161 = vsyncpa [#allocation3], 1
    %162 = vsyncpa [#allocation6], 1
    %163 = vsyncpa [#allocation4], 1

</llo_original>
